<compile_context>
chip_gen: v7x
topology: tpu7x:2x2x1
jax: 0.10.0
libtpu: 0.0.40
codegen_flags: <defaults>
</compile_context>

<pallas_src>
import functools

import numpy as np
import jax
import jax.numpy as jnp
from jax import lax
from jax.experimental import pallas as pl
from jax.experimental.pallas import tpu as pltpu

_K_EPS = 1e-8   # pytorch3d kEpsilon
_LANES = 128
_REC = 10       # per-face record: x0 y0 z0 x1 y1 z1 x2 y2 z2 inv_(2area+eps)
_UNROLL = 4     # faces processed per fori_loop iteration


def ndc_projection(x=0.1, n=1.0, f=50.0):
    return np.array(
        [[n / x, 0, 0, 0],
         [0, n / -x, 0, 0],
         [0, 0, -(f + n) / (f - n), -(2 * f * n) / (f - n)],
         [0, 0, -1, 0]], dtype=np.float32)


def _rasterize_kernel(start_ref, nchunk_ref, rec_ref, fid_ref, px_ref, py_ref,
                      p2f_ref, *, faces_alloc, unroll):
    """Rasterize one (batch, pixel-tile) block; outputs pix_to_face only.

    start_ref:  SMEM i32[B*n_tiles]        first sorted-face index for this tile
    nchunk_ref: SMEM i32[B*n_tiles]        number of UNROLL-chunks for this tile
    rec_ref:    SMEM f32[B*faces_alloc*10] sorted per-face records
    fid_ref:    SMEM i32[B*faces_alloc]    sorted global face ids (b*F + f)
    px_ref:     VMEM f32[TR,128]           NDC x of each pixel in this tile
    py_ref:     VMEM f32[TR,128]           NDC y of each pixel in this tile
    p2f_ref:    VMEM i32[1,TR,128]         pix_to_face (-1 if no hit)
    """
    TR = p2f_ref.shape[1]
    b = pl.program_id(0)
    t = pl.program_id(1)
    n_tiles = pl.num_programs(1)
    bt = b * n_tiles + t

    # Hoisted out of the face loop.
    px = px_ref[...]
    py = py_ref[...]
    start = start_ref[bt]
    nchunks = nchunk_ref[bt]
    rec_base = (b * faces_alloc + start) * _REC
    fid_base = b * faces_alloc + start

    init = (jnp.full((TR, _LANES), jnp.inf, jnp.float32),   # best z
            jnp.full((TR, _LANES), -1, jnp.int32))          # best face id

    def chunk_body(c, carry):
        best_z, best_f = carry
        for u in range(unroll):                   # static unroll inside the body
            off = c * unroll + u
            vb = rec_base + off * _REC
            # Scalar SMEM loads (scalar unit) overlap the previous face's VPU work.
            x0 = rec_ref[vb + 0]; y0 = rec_ref[vb + 1]; z0 = rec_ref[vb + 2]
            x1 = rec_ref[vb + 3]; y1 = rec_ref[vb + 4]; z1 = rec_ref[vb + 5]
            x2 = rec_ref[vb + 6]; y2 = rec_ref[vb + 7]; z2 = rec_ref[vb + 8]
            inv_a = rec_ref[vb + 9]               # 1 / (2*area + kEps), precomputed
            fid = fid_ref[fid_base + off]

            # Exact pytorch3d barycentric edge functions (no 1-w0-w1 shortcut).
            w0 = ((px - x1) * (y2 - y1) - (py - y1) * (x2 - x1)) * inv_a
            w1 = ((px - x2) * (y0 - y2) - (py - y2) * (x0 - x2)) * inv_a
            w2 = ((px - x0) * (y1 - y0) - (py - y0) * (x1 - x0)) * inv_a
            pz = w0 * z0 + w1 * z1 + w2 * z2

            inside = (w0 > 0.0) & (w1 > 0.0) & (w2 > 0.0)
            hit = inside & (pz >= 0.0) & (pz < best_z)

            best_z = jnp.where(hit, pz, best_z)
            best_f = jnp.where(hit, fid, best_f)
        return best_z, best_f

    _, best_f = lax.fori_loop(0, nchunks, chunk_body, init)
    p2f_ref[0] = best_f


def _rasterize_pallas(start_flat, nchunk_flat, rec_flat, fid_flat, px, py, *,
                      B, faces_alloc, n_rows_pad, tile_rows, unroll):
    n_tiles = n_rows_pad // tile_rows
    kernel = functools.partial(_rasterize_kernel,
                               faces_alloc=faces_alloc, unroll=unroll)
    smem = pl.BlockSpec(memory_space=pltpu.MemorySpace.SMEM)
    p2f = pl.pallas_call(
        kernel,
        grid=(B, n_tiles),
        in_specs=[
            smem,                                                   # tile starts
            smem,                                                   # tile chunk counts
            smem,                                                   # sorted face records
            smem,                                                   # sorted global face ids
            pl.BlockSpec((tile_rows, _LANES), lambda b, t: (t, 0)),   # px
            pl.BlockSpec((tile_rows, _LANES), lambda b, t: (t, 0)),   # py
        ],
        out_specs=pl.BlockSpec((1, tile_rows, _LANES), lambda b, t: (b, t, 0)),
        out_shape=jax.ShapeDtypeStruct((B, n_rows_pad, _LANES), jnp.int32),
        compiler_params=pltpu.CompilerParams(
            dimension_semantics=("parallel", "parallel"),   # megacore on v7x
            vmem_limit_bytes=32 * 1024 * 1024,               # safe on 64 MiB v7x
        ),
    )(start_flat, nchunk_flat, rec_flat, fid_flat, px, py)
    return p2f


class MeshRendererPallas:
    """JAX/Pallas port of MeshRenderer (pytorch3d path)."""

    def __init__(self, rasterize_fov, znear=0.1, zfar=10, rasterize_size=224):
        x = np.tan(np.deg2rad(rasterize_fov * 0.5)) * znear
        proj = ndc_projection(x=x, n=znear, f=zfar) @ np.diag(
            np.array([1.0, -1.0, -1.0, 1.0], dtype=np.float32))
        self.ndc_proj = jnp.asarray(proj.astype(np.float32))
        self.rasterize_size = int(rasterize_size)

        # Lane-dense flattened pixel plane (rows of 128 pixels), padded so the
        # row count divides the pixel-tile size.  px/py and per-tile NDC-y
        # bounds depend only on rasterize_size -> computed once here.
        rsize = self.rasterize_size
        total_px = rsize * rsize
        n_rows = -(-total_px // _LANES)
        tile_rows = 32 if n_rows >= 32 else int(-(-n_rows // 8) * 8)
        n_rows_pad = -(-n_rows // tile_rows) * tile_rows
        n_tiles = n_rows_pad // tile_rows
        self._tile_rows = tile_rows
        self._n_rows_pad = n_rows_pad
        self._n_tiles = n_tiles

        flat = np.arange(n_rows_pad * _LANES, dtype=np.int64)
        xi = (flat % rsize).astype(np.float32)
        yi = (flat // rsize).astype(np.float32)
        px = (1.0 - (2.0 * xi + 1.0) / rsize).astype(np.float32)
        py = (1.0 - (2.0 * yi + 1.0) / rsize).astype(np.float32)
        self._px = jnp.asarray(px.reshape(n_rows_pad, _LANES))
        self._py = jnp.asarray(py.reshape(n_rows_pad, _LANES))
        py_t = py.reshape(n_tiles, tile_rows * _LANES)
        self._tile_lo = jnp.asarray(py_t.min(axis=1).astype(np.float32))  # (n_tiles,)
        self._tile_hi = jnp.asarray(py_t.max(axis=1).astype(np.float32))

    def __call__(self, vertex, tri, feat=None):
        """
        vertex: f32[B, N, 3]   camera-space vertices
        tri:    i32[M, 3]      shared triangle indices
        feat:   f32[B, N, Cf]  optional per-vertex features
        returns mask f32[B,1,H,W], depth f32[B,1,H,W], image f32[B,Cf,H,W]|None
        """
        # TODO(synk): list / (B, M, 3) per-batch `tri` re-indexing branch of the
        # reference forward is not implemented; only the shared (M, 3) case.
        B, N, _ = vertex.shape
        rsize = self.rasterize_size
        W = float(rsize)
        total_px = rsize * rsize

        ones = jnp.ones((B, N, 1), dtype=vertex.dtype)
        vert_h = jnp.concatenate([vertex, ones], axis=-1)
        vert_h = vert_h.at[..., 1].multiply(-1.0)             # y flip
        vert_ndc4 = vert_h @ self.ndc_proj.T                  # (B, N, 4)
        vert_ndc = vert_ndc4[..., :3] / vert_ndc4[..., 3:]    # perspective divide
        vert_ndc = vert_ndc.at[..., :2].multiply(-1.0)        # negate NDC x, y

        attr = vert_h[..., 2:3]                               # camera z (depth attr)
        if feat is not None:
            attr = jnp.concatenate([attr, feat.astype(jnp.float32)], axis=-1)
        attr = attr.astype(jnp.float32)
        C = attr.shape[-1]
        F = tri.shape[0]

        flat_idx = tri.reshape(-1)                            # (F*3,)
        face_verts = jnp.take(vert_ndc, flat_idx, axis=1).reshape(
            B, F, 3, 3).astype(jnp.float32)
        face_attrs = jnp.take(attr, flat_idx, axis=1).reshape(B, F, 3, C)

        # ---- Per-face precompute (cheap O(B*F) JAX) ---------------------------
        fx = face_verts[..., 0]; fy = face_verts[..., 1]; fz = face_verts[..., 2]
        x0, x1, x2 = fx[..., 0], fx[..., 1], fx[..., 2]
        y0, y1, y2 = fy[..., 0], fy[..., 1], fy[..., 2]
        area = (x2 - x0) * (y1 - y0) - (y2 - y0) * (x1 - x0)   # 2 * signed area
        inv_a = 1.0 / (area + _K_EPS)

        px_lo = -1.0 + 1.0 / W
        px_hi = 1.0 - 1.0 / W
        valid = jnp.abs(area) > _K_EPS                         # degenerate faces
        valid &= jnp.max(fz, axis=-1) >= 0.0                   # behind image plane
        valid &= (jnp.max(fx, axis=-1) >= px_lo) & (jnp.min(fx, axis=-1) <= px_hi)
        valid &= (jnp.max(fy, axis=-1) >= px_lo) & (jnp.min(fy, axis=-1) <= px_hi)

        face_rec = jnp.concatenate(
            [face_verts.reshape(B, F, 9), inv_a[..., None]], axis=-1)   # (B,F,10)
        face_rec = jnp.where(valid[..., None], face_rec, 0.0)  # zero record never hits

        # ---- Per-tile binning: sort by fy_min, contiguous conservative ranges --
        fy_min = jnp.min(fy, axis=-1)
        fy_max = jnp.max(fy, axis=-1)
        sort_key = jnp.where(valid, fy_min, jnp.inf)           # invalid -> end
        order = jnp.argsort(sort_key, axis=1)                  # (B, F)
        sorted_key = jnp.take_along_axis(sort_key, order, axis=1)
        sorted_rec = jnp.take_along_axis(face_rec, order[..., None], axis=1)
        sorted_fid = (order + jnp.arange(B, dtype=order.dtype)[:, None] * F
                      ).astype(jnp.int32)                      # global packed face ids
        max_h = jnp.max(jnp.where(valid, fy_max - fy_min, 0.0), axis=1)   # (B,)

        # Pad the face axis with UNROLL zero records so rounded counts stay in bounds.
        faces_alloc = F + _UNROLL
        sorted_rec = jnp.concatenate(
            [sorted_rec, jnp.zeros((B, _UNROLL, _REC), jnp.float32)], axis=1)
        sorted_fid = jnp.concatenate(
            [sorted_fid, jnp.zeros((B, _UNROLL), jnp.int32)], axis=1)

        # end  = #faces with fy_min <= tile_y_max          (can touch the tile from above)
        # start = #faces with fy_min <  tile_y_min - max_h (cannot reach the tile at all)
        keys = sorted_key[:, None, :]                                    # (B,1,F)
        end = jnp.sum(keys <= self._tile_hi[None, :, None], axis=-1)     # (B,n_tiles)
        start = jnp.sum(keys < (self._tile_lo[None, :, None]
                                - max_h[:, None, None]), axis=-1)
        count = jnp.maximum(end - start, 0)
        nchunks = (count + _UNROLL - 1) // _UNROLL

        p2f = _rasterize_pallas(
            start.reshape(-1).astype(jnp.int32),
            nchunks.reshape(-1).astype(jnp.int32),
            sorted_rec.reshape(-1).astype(jnp.float32),
            sorted_fid.reshape(-1),
            self._px, self._py,
            B=B, faces_alloc=faces_alloc, n_rows_pad=self._n_rows_pad,
            tile_rows=self._tile_rows, unroll=_UNROLL)

        # ---- Deferred shading (O(pixels), plain JAX) --------------------------
        p2f_img = p2f.reshape(B, -1)[:, :total_px].reshape(B, rsize, rsize)
        hit = p2f_img > -1
        safe_idx = jnp.where(hit, p2f_img, 0).reshape(-1)      # flat global face ids

        packed_verts = face_verts.reshape(B * F, 3, 3)
        packed_inva = inv_a.reshape(B * F)
        packed_attrs = face_attrs.reshape(B * F, 3, C)

        pv = jnp.take(packed_verts, safe_idx, axis=0).reshape(B, rsize, rsize, 3, 3)
        pia = jnp.take(packed_inva, safe_idx, axis=0).reshape(B, rsize, rsize)
        pa = jnp.take(packed_attrs, safe_idx, axis=0).reshape(B, rsize, rsize, 3, C)

        pxi = self._px.reshape(-1)[:total_px].reshape(rsize, rsize)   # (H,W)
        pyi = self._py.reshape(-1)[:total_px].reshape(rsize, rsize)

        vx0, vy0 = pv[..., 0, 0], pv[..., 0, 1]
        vx1, vy1 = pv[..., 1, 0], pv[..., 1, 1]
        vx2, vy2 = pv[..., 2, 0], pv[..., 2, 1]
        w0 = ((pxi - vx1) * (vy2 - vy1) - (pyi - vy1) * (vx2 - vx1)) * pia
        w1 = ((pxi - vx2) * (vy0 - vy2) - (pyi - vy2) * (vx0 - vx2)) * pia
        w2 = ((pxi - vx0) * (vy1 - vy0) - (pyi - vy0) * (vx1 - vx0)) * pia
        bary = jnp.stack([w0, w1, w2], axis=-1)                # (B,H,W,3)

        out = jnp.sum(bary[..., None] * pa, axis=-2)           # (B,H,W,C)
        out = jnp.where(hit[..., None], out, 0.0)
        out_img = jnp.transpose(out, (0, 3, 1, 2))             # (B,C,H,W)

        mask = hit.astype(jnp.float32)[:, None, :, :]          # (B,1,H,W)
        depth = out_img[:, :1]                                 # (B,1,H,W)
        image = out_img[:, 1:] if feat is not None else None   # (B,Cf,H,W)
        return mask, depth, image


if __name__ == "__main__":
    key = jax.random.PRNGKey(0)
    B, N, M, CF = 2, 16, 12, 3
    rsize = 32

    k1, k2, k3, k4 = jax.random.split(key, 4)
    xy = jax.random.uniform(k1, (B, N, 2), minval=-2.0, maxval=2.0)
    z = jax.random.uniform(k2, (B, N, 1), minval=4.0, maxval=6.0)
    vertex = jnp.concatenate([xy, z], axis=-1).astype(jnp.float32)
    tri = jax.random.randint(k3, (M, 3), 0, N, dtype=jnp.int32)
    feat = jax.random.uniform(k4, (B, N, CF), dtype=jnp.float32)

    renderer = MeshRendererPallas(rasterize_fov=60.0, znear=0.1, zfar=10.0,
                                  rasterize_size=rsize)
    mask, depth, image = renderer(vertex, tri, feat=feat)
    jax.block_until_ready((mask, depth, image))

    assert mask.shape == (B, 1, rsize, rsize) and mask.dtype == jnp.float32
    assert depth.shape == (B, 1, rsize, rsize) and depth.dtype == jnp.float32
    assert image.shape == (B, CF, rsize, rsize) and image.dtype == jnp.float32
    print("KERNEL_OK")
</pallas_src>

<mosaic_0001>
module attributes {stable_mosaic.version = 11 : i64} {
  func.func @_rasterize_kernel(%arg0: i32, %arg1: i32, %arg2: memref<2xi32, #tpu.memory_space<smem>>, %arg3: memref<2xi32, #tpu.memory_space<smem>>, %arg4: memref<320xf32, #tpu.memory_space<smem>>, %arg5: memref<32xi32, #tpu.memory_space<smem>>, %arg6: memref<8x128xf32, #tpu.memory_space<vmem>>, %arg7: memref<8x128xf32, #tpu.memory_space<vmem>>, %arg8: memref<1x8x128xi32, #tpu.memory_space<vmem>>) attributes {dimension_semantics = [#tpu.dimension_semantics<parallel>, #tpu.dimension_semantics<parallel>], iteration_bounds = array<i64: 2, 1>, scalar_prefetch = 0 : i64, scratch_operands = 0 : i64, tpu.core_type = #tpu.core_type<tc>, window_params = [{transform_indices = @transform_0, window_bounds = array<i64: 2>}, {transform_indices = @transform_1, window_bounds = array<i64: 2>}, {transform_indices = @transform_2, window_bounds = array<i64: 320>}, {transform_indices = @transform_3, window_bounds = array<i64: 32>}, {transform_indices = @transform_4, window_bounds = array<i64: 8, 128>}, {transform_indices = @transform_5, window_bounds = array<i64: 8, 128>}, {transform_indices = @transform_6, window_bounds = array<i64: 1, 8, 128>}]} {
    %c1_i32 = arith.constant 1 : i32
    %0 = arith.muli %arg0, %c1_i32 : i32
    %1 = arith.addi %0, %arg1 : i32
    %c0 = arith.constant 0 : index
    %c0_0 = arith.constant 0 : index
    %2 = vector.load %arg6[%c0, %c0_0] : memref<8x128xf32, #tpu.memory_space<vmem>>, vector<8x128xf32>
    %c0_1 = arith.constant 0 : index
    %c0_2 = arith.constant 0 : index
    %3 = vector.load %arg7[%c0_1, %c0_2] : memref<8x128xf32, #tpu.memory_space<vmem>>, vector<8x128xf32>
    %4 = arith.index_cast %1 : i32 to index
    %5 = memref.load %arg2[%4] : memref<2xi32, #tpu.memory_space<smem>>
    %6 = arith.index_cast %1 : i32 to index
    %7 = memref.load %arg3[%6] : memref<2xi32, #tpu.memory_space<smem>>
    %c16_i32 = arith.constant 16 : i32
    %8 = arith.muli %arg0, %c16_i32 : i32
    %9 = arith.addi %8, %5 : i32
    %c10_i32 = arith.constant 10 : i32
    %10 = arith.muli %9, %c10_i32 : i32
    %c16_i32_3 = arith.constant 16 : i32
    %11 = arith.muli %arg0, %c16_i32_3 : i32
    %12 = arith.addi %11, %5 : i32
    %cst = arith.constant 0x7F800000 : f32
    %13 = vector.broadcast %cst : f32 to vector<8x128xf32>
    %c-1_i32 = arith.constant -1 : i32
    %14 = vector.broadcast %c-1_i32 : i32 to vector<8x128xi32>
    %c0_i32 = arith.constant 0 : i32
    %15 = arith.subi %7, %c0_i32 : i32
    %16 = arith.addi %c0_i32, %15 : i32
    %c1_i32_4 = arith.constant 1 : i32
    %17:2 = scf.for %arg9 = %c0_i32 to %16 step %c1_i32_4 iter_args(%arg10 = %13, %arg11 = %14) -> (vector<8x128xf32>, vector<8x128xi32>)  : i32 {
      %c4_i32 = arith.constant 4 : i32
      %21 = arith.muli %arg9, %c4_i32 : i32
      %c0_i32_8 = arith.constant 0 : i32
      %22 = arith.addi %21, %c0_i32_8 : i32
      %c10_i32_9 = arith.constant 10 : i32
      %23 = arith.muli %22, %c10_i32_9 : i32
      %24 = arith.addi %10, %23 : i32
      %c0_i32_10 = arith.constant 0 : i32
      %25 = arith.addi %24, %c0_i32_10 : i32
      %26 = arith.index_cast %25 : i32 to index
      %27 = memref.load %arg4[%26] : memref<320xf32, #tpu.memory_space<smem>>
      %c1_i32_11 = arith.constant 1 : i32
      %28 = arith.addi %24, %c1_i32_11 : i32
      %29 = arith.index_cast %28 : i32 to index
      %30 = memref.load %arg4[%29] : memref<320xf32, #tpu.memory_space<smem>>
      %c2_i32 = arith.constant 2 : i32
      %31 = arith.addi %24, %c2_i32 : i32
      %32 = arith.index_cast %31 : i32 to index
      %33 = memref.load %arg4[%32] : memref<320xf32, #tpu.memory_space<smem>>
      %c3_i32 = arith.constant 3 : i32
      %34 = arith.addi %24, %c3_i32 : i32
      %35 = arith.index_cast %34 : i32 to index
      %36 = memref.load %arg4[%35] : memref<320xf32, #tpu.memory_space<smem>>
      %c4_i32_12 = arith.constant 4 : i32
      %37 = arith.addi %24, %c4_i32_12 : i32
      %38 = arith.index_cast %37 : i32 to index
      %39 = memref.load %arg4[%38] : memref<320xf32, #tpu.memory_space<smem>>
      %c5_i32 = arith.constant 5 : i32
      %40 = arith.addi %24, %c5_i32 : i32
      %41 = arith.index_cast %40 : i32 to index
      %42 = memref.load %arg4[%41] : memref<320xf32, #tpu.memory_space<smem>>
      %c6_i32 = arith.constant 6 : i32
      %43 = arith.addi %24, %c6_i32 : i32
      %44 = arith.index_cast %43 : i32 to index
      %45 = memref.load %arg4[%44] : memref<320xf32, #tpu.memory_space<smem>>
      %c7_i32 = arith.constant 7 : i32
      %46 = arith.addi %24, %c7_i32 : i32
      %47 = arith.index_cast %46 : i32 to index
      %48 = memref.load %arg4[%47] : memref<320xf32, #tpu.memory_space<smem>>
      %c8_i32 = arith.constant 8 : i32
      %49 = arith.addi %24, %c8_i32 : i32
      %50 = arith.index_cast %49 : i32 to index
      %51 = memref.load %arg4[%50] : memref<320xf32, #tpu.memory_space<smem>>
      %c9_i32 = arith.constant 9 : i32
      %52 = arith.addi %24, %c9_i32 : i32
      %53 = arith.index_cast %52 : i32 to index
      %54 = memref.load %arg4[%53] : memref<320xf32, #tpu.memory_space<smem>>
      %55 = arith.addi %12, %22 : i32
      %56 = arith.index_cast %55 : i32 to index
      %57 = memref.load %arg5[%56] : memref<32xi32, #tpu.memory_space<smem>>
      %58 = vector.broadcast %36 : f32 to vector<8x128xf32>
      %59 = arith.subf %2, %58 : vector<8x128xf32>
      %60 = arith.subf %48, %39 : f32
      %61 = vector.broadcast %60 : f32 to vector<8x128xf32>
      %62 = arith.mulf %59, %61 : vector<8x128xf32>
      %63 = vector.broadcast %39 : f32 to vector<8x128xf32>
      %64 = arith.subf %3, %63 : vector<8x128xf32>
      %65 = arith.subf %45, %36 : f32
      %66 = vector.broadcast %65 : f32 to vector<8x128xf32>
      %67 = arith.mulf %64, %66 : vector<8x128xf32>
      %68 = arith.subf %62, %67 : vector<8x128xf32>
      %69 = vector.broadcast %54 : f32 to vector<8x128xf32>
      %70 = arith.mulf %68, %69 : vector<8x128xf32>
      %71 = vector.broadcast %45 : f32 to vector<8x128xf32>
      %72 = arith.subf %2, %71 : vector<8x128xf32>
      %73 = arith.subf %30, %48 : f32
      %74 = vector.broadcast %73 : f32 to vector<8x128xf32>
      %75 = arith.mulf %72, %74 : vector<8x128xf32>
      %76 = vector.broadcast %48 : f32 to vector<8x128xf32>
      %77 = arith.subf %3, %76 : vector<8x128xf32>
      %78 = arith.subf %27, %45 : f32
      %79 = vector.broadcast %78 : f32 to vector<8x128xf32>
      %80 = arith.mulf %77, %79 : vector<8x128xf32>
      %81 = arith.subf %75, %80 : vector<8x128xf32>
      %82 = vector.broadcast %54 : f32 to vector<8x128xf32>
      %83 = arith.mulf %81, %82 : vector<8x128xf32>
      %84 = vector.broadcast %27 : f32 to vector<8x128xf32>
      %85 = arith.subf %2, %84 : vector<8x128xf32>
      %86 = arith.subf %39, %30 : f32
      %87 = vector.broadcast %86 : f32 to vector<8x128xf32>
      %88 = arith.mulf %85, %87 : vector<8x128xf32>
      %89 = vector.broadcast %30 : f32 to vector<8x128xf32>
      %90 = arith.subf %3, %89 : vector<8x128xf32>
      %91 = arith.subf %36, %27 : f32
      %92 = vector.broadcast %91 : f32 to vector<8x128xf32>
      %93 = arith.mulf %90, %92 : vector<8x128xf32>
      %94 = arith.subf %88, %93 : vector<8x128xf32>
      %95 = vector.broadcast %54 : f32 to vector<8x128xf32>
      %96 = arith.mulf %94, %95 : vector<8x128xf32>
      %97 = vector.broadcast %33 : f32 to vector<8x128xf32>
      %98 = arith.mulf %70, %97 : vector<8x128xf32>
      %99 = vector.broadcast %42 : f32 to vector<8x128xf32>
      %100 = arith.mulf %83, %99 : vector<8x128xf32>
      %101 = arith.addf %98, %100 : vector<8x128xf32>
      %102 = vector.broadcast %51 : f32 to vector<8x128xf32>
      %103 = arith.mulf %96, %102 : vector<8x128xf32>
      %104 = arith.addf %101, %103 : vector<8x128xf32>
      %cst_13 = arith.constant 0.000000e+00 : f32
      %105 = vector.broadcast %cst_13 : f32 to vector<8x128xf32>
      %106 = arith.cmpf ogt, %70, %105 : vector<8x128xf32>
      %cst_14 = arith.constant 0.000000e+00 : f32
      %107 = vector.broadcast %cst_14 : f32 to vector<8x128xf32>
      %108 = arith.cmpf ogt, %83, %107 : vector<8x128xf32>
      %109 = arith.andi %106, %108 : vector<8x128xi1>
      %cst_15 = arith.constant 0.000000e+00 : f32
      %110 = vector.broadcast %cst_15 : f32 to vector<8x128xf32>
      %111 = arith.cmpf ogt, %96, %110 : vector<8x128xf32>
      %112 = arith.andi %109, %111 : vector<8x128xi1>
      %cst_16 = arith.constant 0.000000e+00 : f32
      %113 = vector.broadcast %cst_16 : f32 to vector<8x128xf32>
      %114 = arith.cmpf oge, %104, %113 : vector<8x128xf32>
      %115 = arith.andi %112, %114 : vector<8x128xi1>
      %116 = arith.cmpf olt, %104, %arg10 : vector<8x128xf32>
      %117 = arith.andi %115, %116 : vector<8x128xi1>
      %118 = arith.select %117, %104, %arg10 : vector<8x128xi1>, vector<8x128xf32>
      %119 = vector.broadcast %57 : i32 to vector<8x128xi32>
      %120 = arith.select %117, %119, %arg11 : vector<8x128xi1>, vector<8x128xi32>
      %c4_i32_17 = arith.constant 4 : i32
      %121 = arith.muli %arg9, %c4_i32_17 : i32
      %c1_i32_18 = arith.constant 1 : i32
      %122 = arith.addi %121, %c1_i32_18 : i32
      %c10_i32_19 = arith.constant 10 : i32
      %123 = arith.muli %122, %c10_i32_19 : i32
      %124 = arith.addi %10, %123 : i32
      %c0_i32_20 = arith.constant 0 : i32
      %125 = arith.addi %124, %c0_i32_20 : i32
      %126 = arith.index_cast %125 : i32 to index
      %127 = memref.load %arg4[%126] : memref<320xf32, #tpu.memory_space<smem>>
      %c1_i32_21 = arith.constant 1 : i32
      %128 = arith.addi %124, %c1_i32_21 : i32
      %129 = arith.index_cast %128 : i32 to index
      %130 = memref.load %arg4[%129] : memref<320xf32, #tpu.memory_space<smem>>
      %c2_i32_22 = arith.constant 2 : i32
      %131 = arith.addi %124, %c2_i32_22 : i32
      %132 = arith.index_cast %131 : i32 to index
      %133 = memref.load %arg4[%132] : memref<320xf32, #tpu.memory_space<smem>>
      %c3_i32_23 = arith.constant 3 : i32
      %134 = arith.addi %124, %c3_i32_23 : i32
      %135 = arith.index_cast %134 : i32 to index
      %136 = memref.load %arg4[%135] : memref<320xf32, #tpu.memory_space<smem>>
      %c4_i32_24 = arith.constant 4 : i32
      %137 = arith.addi %124, %c4_i32_24 : i32
      %138 = arith.index_cast %137 : i32 to index
      %139 = memref.load %arg4[%138] : memref<320xf32, #tpu.memory_space<smem>>
      %c5_i32_25 = arith.constant 5 : i32
      %140 = arith.addi %124, %c5_i32_25 : i32
      %141 = arith.index_cast %140 : i32 to index
      %142 = memref.load %arg4[%141] : memref<320xf32, #tpu.memory_space<smem>>
      %c6_i32_26 = arith.constant 6 : i32
      %143 = arith.addi %124, %c6_i32_26 : i32
      %144 = arith.index_cast %143 : i32 to index
      %145 = memref.load %arg4[%144] : memref<320xf32, #tpu.memory_space<smem>>
      %c7_i32_27 = arith.constant 7 : i32
      %146 = arith.addi %124, %c7_i32_27 : i32
      %147 = arith.index_cast %146 : i32 to index
      %148 = memref.load %arg4[%147] : memref<320xf32, #tpu.memory_space<smem>>
      %c8_i32_28 = arith.constant 8 : i32
      %149 = arith.addi %124, %c8_i32_28 : i32
      %150 = arith.index_cast %149 : i32 to index
      %151 = memref.load %arg4[%150] : memref<320xf32, #tpu.memory_space<smem>>
      %c9_i32_29 = arith.constant 9 : i32
      %152 = arith.addi %124, %c9_i32_29 : i32
      %153 = arith.index_cast %152 : i32 to index
      %154 = memref.load %arg4[%153] : memref<320xf32, #tpu.memory_space<smem>>
      %155 = arith.addi %12, %122 : i32
      %156 = arith.index_cast %155 : i32 to index
      %157 = memref.load %arg5[%156] : memref<32xi32, #tpu.memory_space<smem>>
      %158 = vector.broadcast %136 : f32 to vector<8x128xf32>
      %159 = arith.subf %2, %158 : vector<8x128xf32>
      %160 = arith.subf %148, %139 : f32
      %161 = vector.broadcast %160 : f32 to vector<8x128xf32>
      %162 = arith.mulf %159, %161 : vector<8x128xf32>
      %163 = vector.broadcast %139 : f32 to vector<8x128xf32>
      %164 = arith.subf %3, %163 : vector<8x128xf32>
      %165 = arith.subf %145, %136 : f32
      %166 = vector.broadcast %165 : f32 to vector<8x128xf32>
      %167 = arith.mulf %164, %166 : vector<8x128xf32>
      %168 = arith.subf %162, %167 : vector<8x128xf32>
      %169 = vector.broadcast %154 : f32 to vector<8x128xf32>
      %170 = arith.mulf %168, %169 : vector<8x128xf32>
      %171 = vector.broadcast %145 : f32 to vector<8x128xf32>
      %172 = arith.subf %2, %171 : vector<8x128xf32>
      %173 = arith.subf %130, %148 : f32
      %174 = vector.broadcast %173 : f32 to vector<8x128xf32>
      %175 = arith.mulf %172, %174 : vector<8x128xf32>
      %176 = vector.broadcast %148 : f32 to vector<8x128xf32>
      %177 = arith.subf %3, %176 : vector<8x128xf32>
      %178 = arith.subf %127, %145 : f32
      %179 = vector.broadcast %178 : f32 to vector<8x128xf32>
      %180 = arith.mulf %177, %179 : vector<8x128xf32>
      %181 = arith.subf %175, %180 : vector<8x128xf32>
      %182 = vector.broadcast %154 : f32 to vector<8x128xf32>
      %183 = arith.mulf %181, %182 : vector<8x128xf32>
      %184 = vector.broadcast %127 : f32 to vector<8x128xf32>
      %185 = arith.subf %2, %184 : vector<8x128xf32>
      %186 = arith.subf %139, %130 : f32
      %187 = vector.broadcast %186 : f32 to vector<8x128xf32>
      %188 = arith.mulf %185, %187 : vector<8x128xf32>
      %189 = vector.broadcast %130 : f32 to vector<8x128xf32>
      %190 = arith.subf %3, %189 : vector<8x128xf32>
      %191 = arith.subf %136, %127 : f32
      %192 = vector.broadcast %191 : f32 to vector<8x128xf32>
      %193 = arith.mulf %190, %192 : vector<8x128xf32>
      %194 = arith.subf %188, %193 : vector<8x128xf32>
      %195 = vector.broadcast %154 : f32 to vector<8x128xf32>
      %196 = arith.mulf %194, %195 : vector<8x128xf32>
      %197 = vector.broadcast %133 : f32 to vector<8x128xf32>
      %198 = arith.mulf %170, %197 : vector<8x128xf32>
      %199 = vector.broadcast %142 : f32 to vector<8x128xf32>
      %200 = arith.mulf %183, %199 : vector<8x128xf32>
      %201 = arith.addf %198, %200 : vector<8x128xf32>
      %202 = vector.broadcast %151 : f32 to vector<8x128xf32>
      %203 = arith.mulf %196, %202 : vector<8x128xf32>
      %204 = arith.addf %201, %203 : vector<8x128xf32>
      %cst_30 = arith.constant 0.000000e+00 : f32
      %205 = vector.broadcast %cst_30 : f32 to vector<8x128xf32>
      %206 = arith.cmpf ogt, %170, %205 : vector<8x128xf32>
      %cst_31 = arith.constant 0.000000e+00 : f32
      %207 = vector.broadcast %cst_31 : f32 to vector<8x128xf32>
      %208 = arith.cmpf ogt, %183, %207 : vector<8x128xf32>
      %209 = arith.andi %206, %208 : vector<8x128xi1>
      %cst_32 = arith.constant 0.000000e+00 : f32
      %210 = vector.broadcast %cst_32 : f32 to vector<8x128xf32>
      %211 = arith.cmpf ogt, %196, %210 : vector<8x128xf32>
      %212 = arith.andi %209, %211 : vector<8x128xi1>
      %cst_33 = arith.constant 0.000000e+00 : f32
      %213 = vector.broadcast %cst_33 : f32 to vector<8x128xf32>
      %214 = arith.cmpf oge, %204, %213 : vector<8x128xf32>
      %215 = arith.andi %212, %214 : vector<8x128xi1>
      %216 = arith.cmpf olt, %204, %118 : vector<8x128xf32>
      %217 = arith.andi %215, %216 : vector<8x128xi1>
      %218 = arith.select %217, %204, %118 : vector<8x128xi1>, vector<8x128xf32>
      %219 = vector.broadcast %157 : i32 to vector<8x128xi32>
      %220 = arith.select %217, %219, %120 : vector<8x128xi1>, vector<8x128xi32>
      %c4_i32_34 = arith.constant 4 : i32
      %221 = arith.muli %arg9, %c4_i32_34 : i32
      %c2_i32_35 = arith.constant 2 : i32
      %222 = arith.addi %221, %c2_i32_35 : i32
      %c10_i32_36 = arith.constant 10 : i32
      %223 = arith.muli %222, %c10_i32_36 : i32
      %224 = arith.addi %10, %223 : i32
      %c0_i32_37 = arith.constant 0 : i32
      %225 = arith.addi %224, %c0_i32_37 : i32
      %226 = arith.index_cast %225 : i32 to index
      %227 = memref.load %arg4[%226] : memref<320xf32, #tpu.memory_space<smem>>
      %c1_i32_38 = arith.constant 1 : i32
      %228 = arith.addi %224, %c1_i32_38 : i32
      %229 = arith.index_cast %228 : i32 to index
      %230 = memref.load %arg4[%229] : memref<320xf32, #tpu.memory_space<smem>>
      %c2_i32_39 = arith.constant 2 : i32
      %231 = arith.addi %224, %c2_i32_39 : i32
      %232 = arith.index_cast %231 : i32 to index
      %233 = memref.load %arg4[%232] : memref<320xf32, #tpu.memory_space<smem>>
      %c3_i32_40 = arith.constant 3 : i32
      %234 = arith.addi %224, %c3_i32_40 : i32
      %235 = arith.index_cast %234 : i32 to index
      %236 = memref.load %arg4[%235] : memref<320xf32, #tpu.memory_space<smem>>
      %c4_i32_41 = arith.constant 4 : i32
      %237 = arith.addi %224, %c4_i32_41 : i32
      %238 = arith.index_cast %237 : i32 to index
      %239 = memref.load %arg4[%238] : memref<320xf32, #tpu.memory_space<smem>>
      %c5_i32_42 = arith.constant 5 : i32
      %240 = arith.addi %224, %c5_i32_42 : i32
      %241 = arith.index_cast %240 : i32 to index
      %242 = memref.load %arg4[%241] : memref<320xf32, #tpu.memory_space<smem>>
      %c6_i32_43 = arith.constant 6 : i32
      %243 = arith.addi %224, %c6_i32_43 : i32
      %244 = arith.index_cast %243 : i32 to index
      %245 = memref.load %arg4[%244] : memref<320xf32, #tpu.memory_space<smem>>
      %c7_i32_44 = arith.constant 7 : i32
      %246 = arith.addi %224, %c7_i32_44 : i32
      %247 = arith.index_cast %246 : i32 to index
      %248 = memref.load %arg4[%247] : memref<320xf32, #tpu.memory_space<smem>>
      %c8_i32_45 = arith.constant 8 : i32
      %249 = arith.addi %224, %c8_i32_45 : i32
      %250 = arith.index_cast %249 : i32 to index
      %251 = memref.load %arg4[%250] : memref<320xf32, #tpu.memory_space<smem>>
      %c9_i32_46 = arith.constant 9 : i32
      %252 = arith.addi %224, %c9_i32_46 : i32
      %253 = arith.index_cast %252 : i32 to index
      %254 = memref.load %arg4[%253] : memref<320xf32, #tpu.memory_space<smem>>
      %255 = arith.addi %12, %222 : i32
      %256 = arith.index_cast %255 : i32 to index
      %257 = memref.load %arg5[%256] : memref<32xi32, #tpu.memory_space<smem>>
      %258 = vector.broadcast %236 : f32 to vector<8x128xf32>
      %259 = arith.subf %2, %258 : vector<8x128xf32>
      %260 = arith.subf %248, %239 : f32
      %261 = vector.broadcast %260 : f32 to vector<8x128xf32>
      %262 = arith.mulf %259, %261 : vector<8x128xf32>
      %263 = vector.broadcast %239 : f32 to vector<8x128xf32>
      %264 = arith.subf %3, %263 : vector<8x128xf32>
      %265 = arith.subf %245, %236 : f32
      %266 = vector.broadcast %265 : f32 to vector<8x128xf32>
      %267 = arith.mulf %264, %266 : vector<8x128xf32>
      %268 = arith.subf %262, %267 : vector<8x128xf32>
      %269 = vector.broadcast %254 : f32 to vector<8x128xf32>
      %270 = arith.mulf %268, %269 : vector<8x128xf32>
      %271 = vector.broadcast %245 : f32 to vector<8x128xf32>
      %272 = arith.subf %2, %271 : vector<8x128xf32>
      %273 = arith.subf %230, %248 : f32
      %274 = vector.broadcast %273 : f32 to vector<8x128xf32>
      %275 = arith.mulf %272, %274 : vector<8x128xf32>
      %276 = vector.broadcast %248 : f32 to vector<8x128xf32>
      %277 = arith.subf %3, %276 : vector<8x128xf32>
      %278 = arith.subf %227, %245 : f32
      %279 = vector.broadcast %278 : f32 to vector<8x128xf32>
      %280 = arith.mulf %277, %279 : vector<8x128xf32>
      %281 = arith.subf %275, %280 : vector<8x128xf32>
      %282 = vector.broadcast %254 : f32 to vector<8x128xf32>
      %283 = arith.mulf %281, %282 : vector<8x128xf32>
      %284 = vector.broadcast %227 : f32 to vector<8x128xf32>
      %285 = arith.subf %2, %284 : vector<8x128xf32>
      %286 = arith.subf %239, %230 : f32
      %287 = vector.broadcast %286 : f32 to vector<8x128xf32>
      %288 = arith.mulf %285, %287 : vector<8x128xf32>
      %289 = vector.broadcast %230 : f32 to vector<8x128xf32>
      %290 = arith.subf %3, %289 : vector<8x128xf32>
      %291 = arith.subf %236, %227 : f32
      %292 = vector.broadcast %291 : f32 to vector<8x128xf32>
      %293 = arith.mulf %290, %292 : vector<8x128xf32>
      %294 = arith.subf %288, %293 : vector<8x128xf32>
      %295 = vector.broadcast %254 : f32 to vector<8x128xf32>
      %296 = arith.mulf %294, %295 : vector<8x128xf32>
      %297 = vector.broadcast %233 : f32 to vector<8x128xf32>
      %298 = arith.mulf %270, %297 : vector<8x128xf32>
      %299 = vector.broadcast %242 : f32 to vector<8x128xf32>
      %300 = arith.mulf %283, %299 : vector<8x128xf32>
      %301 = arith.addf %298, %300 : vector<8x128xf32>
      %302 = vector.broadcast %251 : f32 to vector<8x128xf32>
      %303 = arith.mulf %296, %302 : vector<8x128xf32>
      %304 = arith.addf %301, %303 : vector<8x128xf32>
      %cst_47 = arith.constant 0.000000e+00 : f32
      %305 = vector.broadcast %cst_47 : f32 to vector<8x128xf32>
      %306 = arith.cmpf ogt, %270, %305 : vector<8x128xf32>
      %cst_48 = arith.constant 0.000000e+00 : f32
      %307 = vector.broadcast %cst_48 : f32 to vector<8x128xf32>
      %308 = arith.cmpf ogt, %283, %307 : vector<8x128xf32>
      %309 = arith.andi %306, %308 : vector<8x128xi1>
      %cst_49 = arith.constant 0.000000e+00 : f32
      %310 = vector.broadcast %cst_49 : f32 to vector<8x128xf32>
      %311 = arith.cmpf ogt, %296, %310 : vector<8x128xf32>
      %312 = arith.andi %309, %311 : vector<8x128xi1>
      %cst_50 = arith.constant 0.000000e+00 : f32
      %313 = vector.broadcast %cst_50 : f32 to vector<8x128xf32>
      %314 = arith.cmpf oge, %304, %313 : vector<8x128xf32>
      %315 = arith.andi %312, %314 : vector<8x128xi1>
      %316 = arith.cmpf olt, %304, %218 : vector<8x128xf32>
      %317 = arith.andi %315, %316 : vector<8x128xi1>
      %318 = arith.select %317, %304, %218 : vector<8x128xi1>, vector<8x128xf32>
      %319 = vector.broadcast %257 : i32 to vector<8x128xi32>
      %320 = arith.select %317, %319, %220 : vector<8x128xi1>, vector<8x128xi32>
      %c4_i32_51 = arith.constant 4 : i32
      %321 = arith.muli %arg9, %c4_i32_51 : i32
      %c3_i32_52 = arith.constant 3 : i32
      %322 = arith.addi %321, %c3_i32_52 : i32
      %c10_i32_53 = arith.constant 10 : i32
      %323 = arith.muli %322, %c10_i32_53 : i32
      %324 = arith.addi %10, %323 : i32
      %c0_i32_54 = arith.constant 0 : i32
      %325 = arith.addi %324, %c0_i32_54 : i32
      %326 = arith.index_cast %325 : i32 to index
      %327 = memref.load %arg4[%326] : memref<320xf32, #tpu.memory_space<smem>>
      %c1_i32_55 = arith.constant 1 : i32
      %328 = arith.addi %324, %c1_i32_55 : i32
      %329 = arith.index_cast %328 : i32 to index
      %330 = memref.load %arg4[%329] : memref<320xf32, #tpu.memory_space<smem>>
      %c2_i32_56 = arith.constant 2 : i32
      %331 = arith.addi %324, %c2_i32_56 : i32
      %332 = arith.index_cast %331 : i32 to index
      %333 = memref.load %arg4[%332] : memref<320xf32, #tpu.memory_space<smem>>
      %c3_i32_57 = arith.constant 3 : i32
      %334 = arith.addi %324, %c3_i32_57 : i32
      %335 = arith.index_cast %334 : i32 to index
      %336 = memref.load %arg4[%335] : memref<320xf32, #tpu.memory_space<smem>>
      %c4_i32_58 = arith.constant 4 : i32
      %337 = arith.addi %324, %c4_i32_58 : i32
      %338 = arith.index_cast %337 : i32 to index
      %339 = memref.load %arg4[%338] : memref<320xf32, #tpu.memory_space<smem>>
      %c5_i32_59 = arith.constant 5 : i32
      %340 = arith.addi %324, %c5_i32_59 : i32
      %341 = arith.index_cast %340 : i32 to index
      %342 = memref.load %arg4[%341] : memref<320xf32, #tpu.memory_space<smem>>
      %c6_i32_60 = arith.constant 6 : i32
      %343 = arith.addi %324, %c6_i32_60 : i32
      %344 = arith.index_cast %343 : i32 to index
      %345 = memref.load %arg4[%344] : memref<320xf32, #tpu.memory_space<smem>>
      %c7_i32_61 = arith.constant 7 : i32
      %346 = arith.addi %324, %c7_i32_61 : i32
      %347 = arith.index_cast %346 : i32 to index
      %348 = memref.load %arg4[%347] : memref<320xf32, #tpu.memory_space<smem>>
      %c8_i32_62 = arith.constant 8 : i32
      %349 = arith.addi %324, %c8_i32_62 : i32
      %350 = arith.index_cast %349 : i32 to index
      %351 = memref.load %arg4[%350] : memref<320xf32, #tpu.memory_space<smem>>
      %c9_i32_63 = arith.constant 9 : i32
      %352 = arith.addi %324, %c9_i32_63 : i32
      %353 = arith.index_cast %352 : i32 to index
      %354 = memref.load %arg4[%353] : memref<320xf32, #tpu.memory_space<smem>>
      %355 = arith.addi %12, %322 : i32
      %356 = arith.index_cast %355 : i32 to index
      %357 = memref.load %arg5[%356] : memref<32xi32, #tpu.memory_space<smem>>
      %358 = vector.broadcast %336 : f32 to vector<8x128xf32>
      %359 = arith.subf %2, %358 : vector<8x128xf32>
      %360 = arith.subf %348, %339 : f32
      %361 = vector.broadcast %360 : f32 to vector<8x128xf32>
      %362 = arith.mulf %359, %361 : vector<8x128xf32>
      %363 = vector.broadcast %339 : f32 to vector<8x128xf32>
      %364 = arith.subf %3, %363 : vector<8x128xf32>
      %365 = arith.subf %345, %336 : f32
      %366 = vector.broadcast %365 : f32 to vector<8x128xf32>
      %367 = arith.mulf %364, %366 : vector<8x128xf32>
      %368 = arith.subf %362, %367 : vector<8x128xf32>
      %369 = vector.broadcast %354 : f32 to vector<8x128xf32>
      %370 = arith.mulf %368, %369 : vector<8x128xf32>
      %371 = vector.broadcast %345 : f32 to vector<8x128xf32>
      %372 = arith.subf %2, %371 : vector<8x128xf32>
      %373 = arith.subf %330, %348 : f32
      %374 = vector.broadcast %373 : f32 to vector<8x128xf32>
      %375 = arith.mulf %372, %374 : vector<8x128xf32>
      %376 = vector.broadcast %348 : f32 to vector<8x128xf32>
      %377 = arith.subf %3, %376 : vector<8x128xf32>
      %378 = arith.subf %327, %345 : f32
      %379 = vector.broadcast %378 : f32 to vector<8x128xf32>
      %380 = arith.mulf %377, %379 : vector<8x128xf32>
      %381 = arith.subf %375, %380 : vector<8x128xf32>
      %382 = vector.broadcast %354 : f32 to vector<8x128xf32>
      %383 = arith.mulf %381, %382 : vector<8x128xf32>
      %384 = vector.broadcast %327 : f32 to vector<8x128xf32>
      %385 = arith.subf %2, %384 : vector<8x128xf32>
      %386 = arith.subf %339, %330 : f32
      %387 = vector.broadcast %386 : f32 to vector<8x128xf32>
      %388 = arith.mulf %385, %387 : vector<8x128xf32>
      %389 = vector.broadcast %330 : f32 to vector<8x128xf32>
      %390 = arith.subf %3, %389 : vector<8x128xf32>
      %391 = arith.subf %336, %327 : f32
      %392 = vector.broadcast %391 : f32 to vector<8x128xf32>
      %393 = arith.mulf %390, %392 : vector<8x128xf32>
      %394 = arith.subf %388, %393 : vector<8x128xf32>
      %395 = vector.broadcast %354 : f32 to vector<8x128xf32>
      %396 = arith.mulf %394, %395 : vector<8x128xf32>
      %397 = vector.broadcast %333 : f32 to vector<8x128xf32>
      %398 = arith.mulf %370, %397 : vector<8x128xf32>
      %399 = vector.broadcast %342 : f32 to vector<8x128xf32>
      %400 = arith.mulf %383, %399 : vector<8x128xf32>
      %401 = arith.addf %398, %400 : vector<8x128xf32>
      %402 = vector.broadcast %351 : f32 to vector<8x128xf32>
      %403 = arith.mulf %396, %402 : vector<8x128xf32>
      %404 = arith.addf %401, %403 : vector<8x128xf32>
      %cst_64 = arith.constant 0.000000e+00 : f32
      %405 = vector.broadcast %cst_64 : f32 to vector<8x128xf32>
      %406 = arith.cmpf ogt, %370, %405 : vector<8x128xf32>
      %cst_65 = arith.constant 0.000000e+00 : f32
      %407 = vector.broadcast %cst_65 : f32 to vector<8x128xf32>
      %408 = arith.cmpf ogt, %383, %407 : vector<8x128xf32>
      %409 = arith.andi %406, %408 : vector<8x128xi1>
      %cst_66 = arith.constant 0.000000e+00 : f32
      %410 = vector.broadcast %cst_66 : f32 to vector<8x128xf32>
      %411 = arith.cmpf ogt, %396, %410 : vector<8x128xf32>
      %412 = arith.andi %409, %411 : vector<8x128xi1>
      %cst_67 = arith.constant 0.000000e+00 : f32
      %413 = vector.broadcast %cst_67 : f32 to vector<8x128xf32>
      %414 = arith.cmpf oge, %404, %413 : vector<8x128xf32>
      %415 = arith.andi %412, %414 : vector<8x128xi1>
      %416 = arith.cmpf olt, %404, %318 : vector<8x128xf32>
      %417 = arith.andi %415, %416 : vector<8x128xi1>
      %418 = arith.select %417, %404, %318 : vector<8x128xi1>, vector<8x128xf32>
      %419 = vector.broadcast %357 : i32 to vector<8x128xi32>
      %420 = arith.select %417, %419, %320 : vector<8x128xi1>, vector<8x128xi32>
      scf.yield %418, %420 : vector<8x128xf32>, vector<8x128xi32>
    }
    %c0_5 = arith.constant 0 : index
    %c0_6 = arith.constant 0 : index
    %c0_7 = arith.constant 0 : index
    %18 = vector.load %arg8[%c0_5, %c0_6, %c0_7] : memref<1x8x128xi32, #tpu.memory_space<vmem>>, vector<1x8x128xi32>
    %19 = vector.shape_cast %18 : vector<1x8x128xi32> to vector<8x128xi32>
    %20 = vector.shape_cast %17#1 : vector<8x128xi32> to vector<1x8x128xi32>
    tpu.vector_store %arg8[%c0_5, %c0_6, %c0_7], %20 {strides = array<i32>} : memref<1x8x128xi32, #tpu.memory_space<vmem>>, vector<1x8x128xi32>,
    return
  }
  func.func @transform_0(%arg0: i32, %arg1: i32) -> i32 {
    %c0_i32 = arith.constant 0 : i32
    %c0_i32_0 = arith.constant 0 : i32
    return %c0_i32 : i32
  }
  func.func @transform_1(%arg0: i32, %arg1: i32) -> i32 {
    %c0_i32 = arith.constant 0 : i32
    %c0_i32_0 = arith.constant 0 : i32
    return %c0_i32 : i32
  }
  func.func @transform_2(%arg0: i32, %arg1: i32) -> i32 {
    %c0_i32 = arith.constant 0 : i32
    %c0_i32_0 = arith.constant 0 : i32
    return %c0_i32 : i32
  }
  func.func @transform_3(%arg0: i32, %arg1: i32) -> i32 {
    %c0_i32 = arith.constant 0 : i32
    %c0_i32_0 = arith.constant 0 : i32
    return %c0_i32 : i32
  }
  func.func @transform_4(%arg0: i32, %arg1: i32) -> (i32, i32) {
    %c0_i32 = arith.constant 0 : i32
    %c0_i32_0 = arith.constant 0 : i32
    return %arg1, %c0_i32 : i32, i32
  }
  func.func @transform_5(%arg0: i32, %arg1: i32) -> (i32, i32) {
    %c0_i32 = arith.constant 0 : i32
    %c0_i32_0 = arith.constant 0 : i32
    return %arg1, %c0_i32 : i32, i32
  }
  func.func @transform_6(%arg0: i32, %arg1: i32) -> (i32, i32, i32) {
    %c0_i32 = arith.constant 0 : i32
    %c0_i32_0 = arith.constant 0 : i32
    return %arg0, %arg1, %c0_i32 : i32, i32, i32
  }
}

</mosaic_0001>

<llo_original>
// kernel: tpu_custom_call.1
$region0: #{tpu_custom_call.1}
  #allocation0 [shape = 'u32[]', space=smem, size = 0x4, offset = 0x4, fixed_abs, tag = 'smem constant byte address 0x4 - core index']
  #allocation1 [shape = 'u32[144,128]{1,0:T(1,128)}', space=vmem, size = 0x12000, scoped, tag = 'internal scratch']
  %s0 = inlined_call_operand.hbm [shape: s32[2], index: 0, kind: input, shape index: {}]
  %s1 = inlined_call_operand.vmem [shape: s32[2], index: 1, kind: input, shape index: {}]
  %s2 = inlined_call_operand.hbm [shape: f32[320], index: 2, kind: input, shape index: {}]
  %s3 = inlined_call_operand.vmem [shape: s32[32], index: 3, kind: input, shape index: {}]
  %s4 = inlined_call_operand.vmem [shape: f32[8,128], index: 4, kind: input, shape index: {}]
  %s5 = inlined_call_operand.vmem [shape: f32[8,128], index: 5, kind: input, shape index: {}]
  %s6 = inlined_call_operand.hbm [shape: s32[2,8,128], index: 6, kind: output, shape index: {}]
  %s7 = sld [smem:[#allocation0]]
  $region80: #{tpu_custom_call.1} parent=0
    _
  %s9 = ssub.s32 1, %s7
  %s10 = scalar_select 0, %s9, %s7
  $region1: #{tpu_custom_call.1} parent=0
    #allocation2 [shape = 'u8[512]{0}', space=smem, size = 0x200, scoped, tag = 'input window, operand 0, single buffered']
    #allocation3 [shape = 's32[2]{0}', space=sflag, size = 0x8, scoped, tag = 'scoped memory for tpu_custom_call.1']
    #allocation4 [shape = 's32[2]{0}', space=sflag, size = 0x8, scoped, tag = 'scoped memory for tpu_custom_call.1']
    #allocation5 [shape = 's32[2]{0}', space=sflag, size = 0x8, scoped, tag = 'scoped memory for tpu_custom_call.1']
    #allocation6 [shape = 'u8[512]{0}', space=smem, size = 0x200, scoped, tag = 'input window, operand 1, single buffered']
    #allocation7 [shape = 'u8[1536]{0}', space=smem, size = 0x600, scoped, tag = 'input window, operand 2, single buffered']
    #allocation8 [shape = 's32[1]{0}', space=sflag, size = 0x4, scoped, tag = 'scoped memory for tpu_custom_call.1']
    #allocation9 [shape = 'u8[512]{0}', space=smem, size = 0x200, scoped, tag = 'input window, operand 3, single buffered']
    #allocation10 [shape = 's32[1]{0}', space=sflag, size = 0x4, scoped, tag = 'scoped memory for tpu_custom_call.1']
    #allocation11 [shape = 'u8[8192]{0}', space=vmem, size = 0x2000, scoped, tag = 'output window, operand 0']
    %11 = vsyncpa [#allocation4], 0
    %12 = vsyncpa [#allocation5], 0
    %13 = vsyncpa [#allocation8], 0
    %14 = vsyncpa [#allocation10], 0
    %15 = vsyncpa [#allocation3], 0
    %s16 = scalar_lea.sflag [#allocation3], 1
    %17 = vsyncpa %s16, 0
    loop: start=0, step=1, limit=4
    $region2: #{tpu_custom_call.1} parent=1 // loop_pre_header
      _
    $region3: #{tpu_custom_call.1} parent=1 // loop_header
      %s19 = sphi 0, %s23
      %p20 = scmp.ge.s32.totalorder %s19, 4
      %s26 = sphi 0, %s38
      %s27 = sphi 0, %s34
      %s28 = sphi 0, %s26
      %s29 = sphi 0, %s27
      %s30 = sphi 0, %s28
      %s31 = sphi 0, %s29
      %s39 = sphi 0, %s39
      %s41 = sphi 0, %s39
      %s42 = sphi 0, %s41
      %s56 = sphi 0, %s42
      %s60 = sphi 0, %s60
      %s62 = sphi 0, %s60
      %s63 = sphi 0, %s62
      %s77 = sphi 0, %s63
      %s81 = sphi 0, %s81
      %s83 = sphi 0, %s81
      %s84 = sphi 0, %s83
      %s98 = sphi 0, %s84
      %s102 = sphi 0, %s102
      %s104 = sphi 0, %s102
      %s105 = sphi 0, %s104
      %s119 = sphi 0, %s105
      %s125 = sphi 0, %s127
      %s128 = sphi 0, %s125
      %s129 = sphi 0, %s128
      %s145 = sphi 0, %s129
      %s151 = sphi 0, %s153
      %s154 = sphi 0, %s151
      %s155 = sphi 0, %s154
      %s171 = sphi 0, %s155
      %s179 = sphi 0, %s181
      %s182 = sphi 0, %s179
      %s183 = sphi 0, %s182
      %s199 = sphi 0, %s183
    $region4: #{tpu_custom_call.1} parent=1 // loop_header_branch
      %22 = sbr.rel (%p20) target = $region8
    $region5: #{tpu_custom_call.1} parent=1 // loop_body
      %s24 = ssub.s32 %s19, 1
      %s25 = ssub.s32 %s19, 2
      %s32 = sadd.s32 1, %s27
      %p33 = scmp.ge.s32.totalorder %s32, 1
      %s34 = scalar_select %p33, 0, %s32
      %s35 = sadd.s32 1, %s26
      %s36 = scalar_select %p33, %s35, %s26
      %p37 = scmp.ge.s32.totalorder %s36, 2
      %s38 = scalar_select %p37, 0, %s36
      %s40 = sadd.s32 %s39, 1
      %p43 = scmp.eq.s32.totalorder %s19, 1
      %p44 = scmp.ne.s32.totalorder %s39, %s41
      %p45 = scmp.eq.s32.totalorder %s19, 0
      %p46 = por %p44, %p45
      %p47 = scmp.ne.s32.totalorder %s39, %s41
      %p48 = scmp.eq.s32.totalorder %s24, 1
      %p49 = por %p47, %p48
      %p50 = scmp.ne.s32.totalorder %s41, %s42
      %p51 = scmp.eq.s32.totalorder %s24, 0
      %p52 = por %p50, %p51
      %p53 = scmp.ne.s32.totalorder %s41, %s42
      %p54 = scmp.eq.s32.totalorder %s25, 1
      %p55 = por %p53, %p54
      %p57 = scmp.ne.s32.totalorder %s42, %s56
      %p58 = scmp.eq.s32.totalorder %s25, 0
      %p59 = por %p57, %p58
      %s61 = sadd.s32 %s60, 1
      %p64 = scmp.eq.s32.totalorder %s19, 1
      %p65 = scmp.ne.s32.totalorder %s60, %s62
      %p66 = scmp.eq.s32.totalorder %s19, 0
      %p67 = por %p65, %p66
      %p68 = scmp.ne.s32.totalorder %s60, %s62
      %p69 = scmp.eq.s32.totalorder %s24, 1
      %p70 = por %p68, %p69
      %p71 = scmp.ne.s32.totalorder %s62, %s63
      %p72 = scmp.eq.s32.totalorder %s24, 0
      %p73 = por %p71, %p72
      %p74 = scmp.ne.s32.totalorder %s62, %s63
      %p75 = scmp.eq.s32.totalorder %s25, 1
      %p76 = por %p74, %p75
      %p78 = scmp.ne.s32.totalorder %s63, %s77
      %p79 = scmp.eq.s32.totalorder %s25, 0
      %p80 = por %p78, %p79
      %s82 = sadd.s32 %s81, 1
      %p85 = scmp.eq.s32.totalorder %s19, 1
      %p86 = scmp.ne.s32.totalorder %s81, %s83
      %p87 = scmp.eq.s32.totalorder %s19, 0
      %p88 = por %p86, %p87
      %p89 = scmp.ne.s32.totalorder %s81, %s83
      %p90 = scmp.eq.s32.totalorder %s24, 1
      %p91 = por %p89, %p90
      %p92 = scmp.ne.s32.totalorder %s83, %s84
      %p93 = scmp.eq.s32.totalorder %s24, 0
      %p94 = por %p92, %p93
      %p95 = scmp.ne.s32.totalorder %s83, %s84
      %p96 = scmp.eq.s32.totalorder %s25, 1
      %p97 = por %p95, %p96
      %p99 = scmp.ne.s32.totalorder %s84, %s98
      %p100 = scmp.eq.s32.totalorder %s25, 0
      %p101 = por %p99, %p100
      %s103 = sadd.s32 %s102, 1
      %p106 = scmp.eq.s32.totalorder %s19, 1
      %p107 = scmp.ne.s32.totalorder %s102, %s104
      %p108 = scmp.eq.s32.totalorder %s19, 0
      %p109 = por %p107, %p108
      %p110 = scmp.ne.s32.totalorder %s102, %s104
      %p111 = scmp.eq.s32.totalorder %s24, 1
      %p112 = por %p110, %p111
      %p113 = scmp.ne.s32.totalorder %s104, %s105
      %p114 = scmp.eq.s32.totalorder %s24, 0
      %p115 = por %p113, %p114
      %p116 = scmp.ne.s32.totalorder %s104, %s105
      %p117 = scmp.eq.s32.totalorder %s25, 1
      %p118 = por %p116, %p117
      %p120 = scmp.ne.s32.totalorder %s105, %s119
      %p121 = scmp.eq.s32.totalorder %s25, 0
      %p122 = por %p120, %p121
      %s123 = ssub.s32 %s27, %s34
      %p124 = scmp.eq.s32.totalorder %s123, 0
      %s126 = sadd.s32 %s125, 1
      %s127 = scalar_select %p124, %s125, %s126
      %p130 = pneg %p124
      %p131 = scmp.eq.s32.totalorder %s19, 1
      %p132 = por %p130, %p131
      %p133 = scmp.ne.s32.totalorder %s125, %s128
      %p134 = scmp.eq.s32.totalorder %s19, 0
      %p135 = por %p133, %p134
      %p136 = scmp.ne.s32.totalorder %s125, %s128
      %p137 = scmp.eq.s32.totalorder %s24, 1
      %p138 = por %p136, %p137
      %p139 = scmp.ne.s32.totalorder %s128, %s129
      %p140 = scmp.eq.s32.totalorder %s24, 0
      %p141 = por %p139, %p140
      %p142 = scmp.ne.s32.totalorder %s128, %s129
      %p143 = scmp.eq.s32.totalorder %s25, 1
      %p144 = por %p142, %p143
      %p146 = scmp.ne.s32.totalorder %s129, %s145
      %p147 = scmp.eq.s32.totalorder %s25, 0
      %p148 = por %p146, %p147
      %s149 = ssub.s32 %s27, %s34
      %p150 = scmp.eq.s32.totalorder %s149, 0
      %s152 = sadd.s32 %s151, 1
      %s153 = scalar_select %p150, %s151, %s152
      %p156 = pneg %p150
      %p157 = scmp.eq.s32.totalorder %s19, 1
      %p158 = por %p156, %p157
      %p159 = scmp.ne.s32.totalorder %s151, %s154
      %p160 = scmp.eq.s32.totalorder %s19, 0
      %p161 = por %p159, %p160
      %p162 = scmp.ne.s32.totalorder %s151, %s154
      %p163 = scmp.eq.s32.totalorder %s24, 1
      %p164 = por %p162, %p163
      %p165 = scmp.ne.s32.totalorder %s154, %s155
      %p166 = scmp.eq.s32.totalorder %s24, 0
      %p167 = por %p165, %p166
      %p168 = scmp.ne.s32.totalorder %s154, %s155
      %p169 = scmp.eq.s32.totalorder %s25, 1
      %p170 = por %p168, %p169
      %p172 = scmp.ne.s32.totalorder %s155, %s171
      %p173 = scmp.eq.s32.totalorder %s25, 0
      %p174 = por %p172, %p173
      %s175 = ssub.s32 %s26, %s38
      %s176 = ssub.s32 %s27, %s34
      %s177 = sor.u32 %s175, %s176
      %p178 = scmp.eq.s32.totalorder %s177, 0
      %s180 = sadd.s32 %s179, 1
      %s181 = scalar_select %p178, %s179, %s180
      %p184 = pneg %p178
      %p185 = scmp.eq.s32.totalorder %s19, 1
      %p186 = por %p184, %p185
      %p187 = scmp.ne.s32.totalorder %s179, %s182
      %p188 = scmp.eq.s32.totalorder %s19, 0
      %p189 = por %p187, %p188
      %p190 = scmp.ne.s32.totalorder %s179, %s182
      %p191 = scmp.eq.s32.totalorder %s24, 1
      %p192 = por %p190, %p191
      %p193 = scmp.ne.s32.totalorder %s182, %s183
      %p194 = scmp.eq.s32.totalorder %s24, 0
      %p195 = por %p193, %p194
      %p196 = scmp.ne.s32.totalorder %s182, %s183
      %p197 = scmp.eq.s32.totalorder %s25, 1
      %p198 = por %p196, %p197
      %p200 = scmp.ne.s32.totalorder %s183, %s199
      %p201 = scmp.eq.s32.totalorder %s25, 0
      %p202 = por %p200, %p201
      %p203 = scmp.le.s32.totalorder 1, %s19
      %p204 = scmp.lt.s32.totalorder %s19, 3
      %p205 = pnand %p203, %p204
      %p206 = pneg %p205
      // Predicated region
      $region9: #{tpu_custom_call.1} parent=5 // pred_check
        _
      $region10: #{tpu_custom_call.1} parent=5 // pred_check_branch
        %208 = sbr.rel (%p205) target = $region12
      $region11: #{tpu_custom_call.1} parent=5 // pred_region
        %s209 = ssub.s32 %s19, 1
        // Predicated region
        $region13: #{tpu_custom_call.1} parent=11 // pred_check
          %p210 = pneg %p52
        $region14: #{tpu_custom_call.1} parent=11 // pred_check_branch
          %212 = sbr.rel (%p210) target = $region16
        $region15: #{tpu_custom_call.1} parent=11 // pred_region
          %s214 = ssub.s32 16, 16
          %215 = vsyncadd [#allocation4], %s214
          %218 = dma.hbm_to_smem %s0, 16, [#allocation2], [#allocation4]
        $region16: #{tpu_custom_call.1} parent=11 // pred_fallthru
          _
        // Predicated region
        $region17: #{tpu_custom_call.1} parent=11 // pred_check
          %p219 = pneg %p73
        $region18: #{tpu_custom_call.1} parent=11 // pred_check_branch
          %221 = sbr.rel (%p219) target = $region20
        $region19: #{tpu_custom_call.1} parent=11 // pred_region
          %s223 = ssub.s32 16, 16
          %224 = vsyncadd [#allocation5], %s223
          %s226 = sshll.u32 %s1, 4
          %s227 = int_to_ptr.vmem [resolvable:$true] %s226
          %229 = dma.vmem_to_smem %s227, 16, [#allocation6], [#allocation5]
        $region20: #{tpu_custom_call.1} parent=11 // pred_fallthru
          _
        // Predicated region
        $region21: #{tpu_custom_call.1} parent=11 // pred_check
          %p230 = pneg %p94
        $region22: #{tpu_custom_call.1} parent=11 // pred_check_branch
          %232 = sbr.rel (%p230) target = $region24
        $region23: #{tpu_custom_call.1} parent=11 // pred_region
          %s234 = ssub.s32 48, 48
          %235 = vsyncadd [#allocation8], %s234
          %238 = dma.hbm_to_smem %s2, 48, [#allocation7], [#allocation8]
        $region24: #{tpu_custom_call.1} parent=11 // pred_fallthru
          _
        // Predicated region
        $region25: #{tpu_custom_call.1} parent=11 // pred_check
          %p239 = pneg %p115
        $region26: #{tpu_custom_call.1} parent=11 // pred_check_branch
          %241 = sbr.rel (%p239) target = $region28
        $region27: #{tpu_custom_call.1} parent=11 // pred_region
          %s243 = ssub.s32 16, 16
          %244 = vsyncadd [#allocation10], %s243
          %s246 = sshll.u32 %s3, 4
          %s247 = int_to_ptr.vmem [resolvable:$true] %s246
          %249 = dma.vmem_to_smem %s247, 16, [#allocation9], [#allocation10]
        $region28: #{tpu_custom_call.1} parent=11 // pred_fallthru
          _
        // Predicated region
        $region29: #{tpu_custom_call.1} parent=11 // pred_check
          %p250 = pneg %p141
        $region30: #{tpu_custom_call.1} parent=11 // pred_check_branch
          %252 = sbr.rel (%p250) target = $region32
        $region31: #{tpu_custom_call.1} parent=11 // pred_region
          %p253 = scmp.lt.s32.totalorder %s29, 0
          %s254 = scalar_select %p253, %s29, 0
          %s255 = smul.addr %s254, 8
          %s256 = scalar_lea.vmem %s4, %s255
        $region32: #{tpu_custom_call.1} parent=11 // pred_fallthru
          _
        // Predicated region
        $region33: #{tpu_custom_call.1} parent=11 // pred_check
          %p257 = pneg %p167
        $region34: #{tpu_custom_call.1} parent=11 // pred_check_branch
          %259 = sbr.rel (%p257) target = $region36
        $region35: #{tpu_custom_call.1} parent=11 // pred_region
          %p260 = scmp.lt.s32.totalorder %s29, 0
          %s261 = scalar_select %p260, %s29, 0
          %s262 = smul.addr %s261, 8
          %s263 = scalar_lea.vmem %s5, %s262
        $region36: #{tpu_custom_call.1} parent=11 // pred_fallthru
          _
      $region12: #{tpu_custom_call.1} parent=5 // pred_fallthru
        _
      %p264 = scmp.lt.s32.totalorder %s19, 2
      // Predicated region
      $region37: #{tpu_custom_call.1} parent=5 // pred_check
        %p265 = pneg %p264
      $region38: #{tpu_custom_call.1} parent=5 // pred_check_branch
        %267 = sbr.rel (%p265) target = $region40
      $region39: #{tpu_custom_call.1} parent=5 // pred_region
        _
      $region40: #{tpu_custom_call.1} parent=5 // pred_fallthru
        _
      %p268 = scmp.le.s32.totalorder 1, %s19
      %p269 = scmp.lt.s32.totalorder %s19, 3
      %p270 = pnand %p268, %p269
      %p271 = pneg %p270
      // Predicated region
      $region41: #{tpu_custom_call.1} parent=5 // pred_check
        _
      $region42: #{tpu_custom_call.1} parent=5 // pred_check_branch
        %273 = sbr.rel (%p270) target = $region44
      $region43: #{tpu_custom_call.1} parent=5 // pred_region
        %s274 = ssub.s32 %s19, 1
        // Predicated region
        $region45: #{tpu_custom_call.1} parent=43 // pred_check
          %p275 = pneg %p52
        $region46: #{tpu_custom_call.1} parent=43 // pred_check_branch
          %277 = sbr.rel (%p275) target = $region48
        $region47: #{tpu_custom_call.1} parent=43 // pred_region
          %278 = dma.done [#allocation4], 16
        $region48: #{tpu_custom_call.1} parent=43 // pred_fallthru
          _
        // Predicated region
        $region49: #{tpu_custom_call.1} parent=43 // pred_check
          %p279 = pneg %p73
        $region50: #{tpu_custom_call.1} parent=43 // pred_check_branch
          %281 = sbr.rel (%p279) target = $region52
        $region51: #{tpu_custom_call.1} parent=43 // pred_region
          %282 = dma.done [#allocation5], 16
        $region52: #{tpu_custom_call.1} parent=43 // pred_fallthru
          _
        // Predicated region
        $region53: #{tpu_custom_call.1} parent=43 // pred_check
          %p283 = pneg %p94
        $region54: #{tpu_custom_call.1} parent=43 // pred_check_branch
          %285 = sbr.rel (%p283) target = $region56
        $region55: #{tpu_custom_call.1} parent=43 // pred_region
          %286 = dma.done [#allocation8], 48
        $region56: #{tpu_custom_call.1} parent=43 // pred_fallthru
          _
        // Predicated region
        $region57: #{tpu_custom_call.1} parent=43 // pred_check
          %p287 = pneg %p115
        $region58: #{tpu_custom_call.1} parent=43 // pred_check_branch
          %289 = sbr.rel (%p287) target = $region60
        $region59: #{tpu_custom_call.1} parent=43 // pred_region
          %290 = dma.done [#allocation10], 16
        $region60: #{tpu_custom_call.1} parent=43 // pred_fallthru
          _
        %291 = sfence
        %p292 = pneg %p52
        %p293 = pneg %p49
        %p294 = pneg %p73
        %p295 = pneg %p70
        %p296 = pneg %p94
        %p297 = pneg %p91
        %p298 = pneg %p115
        %p299 = pneg %p112
        %p300 = scmp.lt.s32.totalorder %s29, 0
        %s301 = scalar_select %p300, %s29, 0
        %s302 = smul.addr %s301, 8
        %s303 = scalar_lea.vmem %s4, %s302
        %p304 = pneg %p141
        %p305 = pneg %p138
        %p306 = scmp.lt.s32.totalorder %s29, 0
        %s307 = scalar_select %p306, %s29, 0
        %s308 = smul.addr %s307, 8
        %s309 = scalar_lea.vmem %s5, %s308
        %p310 = pneg %p167
        %p311 = pneg %p164
        %p312 = pneg %p195
        %p313 = pneg %p192
        %s314 = sand.u32 %s182, 1
        %s315 = scalar_lea.sflag [#allocation3], %s314
        %s316 = sand.u32 %s182, 1
        %s317 = smul.addr %s316, 8
        %s318 = scalar_lea.vmem [#allocation11], %s317
        %p319 = scmp.lt.s32.totalorder %s29, 0
        %s320 = scalar_select %p319, %s29, 0
        %s321 = smul.addr %s320, 8
        %s322 = scalar_lea.vmem %s4, %s321
        %p323 = scmp.lt.s32.totalorder %s29, 0
        %s324 = scalar_select %p323, %s29, 0
        %s325 = smul.addr %s324, 8
        %s326 = scalar_lea.vmem %s5, %s325
        %s327 = sadd.s32 %s28, %s29
        %v328 = vld [vmem:[%s322] sm:$0xff]
        %v329 = vld [vmem:[%s326] sm:$0xff]
        %s330 = sld [smem:[#allocation2 + %s327]]
        %s331 = sld [smem:[#allocation6 + %s327]]
        %s332 = smul.u32 %s28, 16
        %s333 = sadd.s32 %s332, %s330
        %s334 = smul.u32 %s333, 10
        // While loop
        $region61: #{tpu_custom_call.1} parent=43 // loop_pre_header
          _
        $region62: #{tpu_custom_call.1} parent=43 // loop_header
          %s336 = sphi 0, %s338
          %p337 = scmp.ge.s32.totalorder %s336, %s331
          %v341 = vphi inf, %v664
          %v342 = vphi 4294967295, %v666
        $region63: #{tpu_custom_call.1} parent=43 // loop_header_branch
          %340 = sbr.rel (%p337) target = $region67
        $region64: #{tpu_custom_call.1} parent=43 // loop_body
          %s343 = smul.u32 %s336, 4
          %s344 = smul.u32 %s336, 40
          %s345 = sadd.s32 %s334, %s344
          %s346 = sld [smem:[#allocation7 + %s345]]
          %s347 = sadd.s32 %s345, 1
          %s348 = sld [smem:[#allocation7 + %s347]]
          %s349 = sadd.s32 %s345, 2
          %s350 = sld [smem:[#allocation7 + %s349]]
          %s351 = sadd.s32 %s345, 3
          %s352 = sld [smem:[#allocation7 + %s351]]
          %s353 = sadd.s32 %s345, 4
          %s354 = sld [smem:[#allocation7 + %s353]]
          %s355 = sadd.s32 %s345, 5
          %s356 = sld [smem:[#allocation7 + %s355]]
          %s357 = sadd.s32 %s345, 6
          %s358 = sld [smem:[#allocation7 + %s357]]
          %s359 = sadd.s32 %s345, 7
          %s360 = sld [smem:[#allocation7 + %s359]]
          %s361 = sadd.s32 %s345, 8
          %s362 = sld [smem:[#allocation7 + %s361]]
          %s363 = sadd.s32 %s345, 9
          %s364 = sld [smem:[#allocation7 + %s363]]
          %s365 = sadd.s32 %s333, %s343
          %s366 = sld [smem:[#allocation9 + %s365]]
          %v367 = vstv %s352
          %v368 = vsub.f32 %v328, %v367
          %s369 = ssub.f32 %s360, %s354
          %v370 = vstv %s369
          %v371 = vmul.f32 %v368, %v370
          %v372 = vstv %s354
          %v373 = vsub.f32 %v329, %v372
          %s374 = ssub.f32 %s358, %s352
          %v375 = vstv %s374
          %v376 = vmul.f32 %v373, %v375
          %v377 = vsub.f32 %v371, %v376
          %v378 = vstv %s364
          %v379 = vmul.f32 %v377, %v378
          %v380 = vstv %s358
          %v381 = vsub.f32 %v328, %v380
          %s382 = ssub.f32 %s348, %s360
          %v383 = vstv %s382
          %v384 = vmul.f32 %v381, %v383
          %v385 = vstv %s360
          %v386 = vsub.f32 %v329, %v385
          %s387 = ssub.f32 %s346, %s358
          %v388 = vstv %s387
          %v389 = vmul.f32 %v386, %v388
          %v390 = vsub.f32 %v384, %v389
          %v391 = vmul.f32 %v390, %v378
          %v392 = vstv %s346
          %v393 = vsub.f32 %v328, %v392
          %s394 = ssub.f32 %s354, %s348
          %v395 = vstv %s394
          %v396 = vmul.f32 %v393, %v395
          %v397 = vstv %s348
          %v398 = vsub.f32 %v329, %v397
          %s399 = ssub.f32 %s352, %s346
          %v400 = vstv %s399
          %v401 = vmul.f32 %v398, %v400
          %v402 = vsub.f32 %v396, %v401
          %v403 = vmul.f32 %v402, %v378
          %v404 = vstv %s350
          %v405 = vmul.f32 %v379, %v404
          %v406 = vstv %s356
          %v407 = vmul.f32 %v391, %v406
          %v408 = vadd.f32 %v405, %v407
          %v409 = vstv %s362
          %v410 = vmul.f32 %v403, %v409
          %v411 = vadd.f32 %v408, %v410
          %vm412 = vcmp.gt.f32.partialorder %v379, 0.0
          %vm413 = vcmp.gt.f32.partialorder %v391, 0.0
          %vm414 = vmand %vm412, %vm413
          %vm415 = vcmp.gt.f32.partialorder %v403, 0.0
          %vm416 = vmand %vm414, %vm415
          %vm417 = vcmp.ge.f32.partialorder %v411, 0.0
          %vm418 = vmand %vm416, %vm417
          %vm419 = vcmp.lt.f32.partialorder %v411, %v341
          %vm420 = vmand %vm418, %vm419
          %v421 = vsel %vm420, %v411, %v341
          %v422 = vstv %s366
          %v423 = vsel %vm420, %v422, %v342
          %s424 = sadd.s32 %s343, 1
          %s425 = smul.u32 %s424, 10
          %s426 = sadd.s32 %s334, %s425
          %s427 = sld [smem:[#allocation7 + %s426]]
          %s428 = sadd.s32 %s426, 1
          %s429 = sld [smem:[#allocation7 + %s428]]
          %s430 = sadd.s32 %s426, 2
          %s431 = sld [smem:[#allocation7 + %s430]]
          %s432 = sadd.s32 %s426, 3
          %s433 = sld [smem:[#allocation7 + %s432]]
          %s434 = sadd.s32 %s426, 4
          %s435 = sld [smem:[#allocation7 + %s434]]
          %s436 = sadd.s32 %s426, 5
          %s437 = sld [smem:[#allocation7 + %s436]]
          %s438 = sadd.s32 %s426, 6
          %s439 = sld [smem:[#allocation7 + %s438]]
          %s440 = sadd.s32 %s426, 7
          %s441 = sld [smem:[#allocation7 + %s440]]
          %s442 = sadd.s32 %s426, 8
          %s443 = sld [smem:[#allocation7 + %s442]]
          %s444 = sadd.s32 %s426, 9
          %s445 = sld [smem:[#allocation7 + %s444]]
          %s446 = sadd.s32 %s333, %s424
          %s447 = sld [smem:[#allocation9 + %s446]]
          %v448 = vstv %s433
          %v449 = vsub.f32 %v328, %v448
          %s450 = ssub.f32 %s441, %s435
          %v451 = vstv %s450
          %v452 = vmul.f32 %v449, %v451
          %v453 = vstv %s435
          %v454 = vsub.f32 %v329, %v453
          %s455 = ssub.f32 %s439, %s433
          %v456 = vstv %s455
          %v457 = vmul.f32 %v454, %v456
          %v458 = vsub.f32 %v452, %v457
          %v459 = vstv %s445
          %v460 = vmul.f32 %v458, %v459
          %v461 = vstv %s439
          %v462 = vsub.f32 %v328, %v461
          %s463 = ssub.f32 %s429, %s441
          %v464 = vstv %s463
          %v465 = vmul.f32 %v462, %v464
          %v466 = vstv %s441
          %v467 = vsub.f32 %v329, %v466
          %s468 = ssub.f32 %s427, %s439
          %v469 = vstv %s468
          %v470 = vmul.f32 %v467, %v469
          %v471 = vsub.f32 %v465, %v470
          %v472 = vmul.f32 %v471, %v459
          %v473 = vstv %s427
          %v474 = vsub.f32 %v328, %v473
          %s475 = ssub.f32 %s435, %s429
          %v476 = vstv %s475
          %v477 = vmul.f32 %v474, %v476
          %v478 = vstv %s429
          %v479 = vsub.f32 %v329, %v478
          %s480 = ssub.f32 %s433, %s427
          %v481 = vstv %s480
          %v482 = vmul.f32 %v479, %v481
          %v483 = vsub.f32 %v477, %v482
          %v484 = vmul.f32 %v483, %v459
          %v485 = vstv %s431
          %v486 = vmul.f32 %v460, %v485
          %v487 = vstv %s437
          %v488 = vmul.f32 %v472, %v487
          %v489 = vadd.f32 %v486, %v488
          %v490 = vstv %s443
          %v491 = vmul.f32 %v484, %v490
          %v492 = vadd.f32 %v489, %v491
          %vm493 = vcmp.gt.f32.partialorder %v460, 0.0
          %vm494 = vcmp.gt.f32.partialorder %v472, 0.0
          %vm495 = vmand %vm493, %vm494
          %vm496 = vcmp.gt.f32.partialorder %v484, 0.0
          %vm497 = vmand %vm495, %vm496
          %vm498 = vcmp.ge.f32.partialorder %v492, 0.0
          %vm499 = vmand %vm497, %vm498
          %vm500 = vcmp.lt.f32.partialorder %v492, %v421
          %vm501 = vmand %vm499, %vm500
          %v502 = vsel %vm501, %v492, %v421
          %v503 = vstv %s447
          %v504 = vsel %vm501, %v503, %v423
          %s505 = sadd.s32 %s343, 2
          %s506 = smul.u32 %s505, 10
          %s507 = sadd.s32 %s334, %s506
          %s508 = sld [smem:[#allocation7 + %s507]]
          %s509 = sadd.s32 %s507, 1
          %s510 = sld [smem:[#allocation7 + %s509]]
          %s511 = sadd.s32 %s507, 2
          %s512 = sld [smem:[#allocation7 + %s511]]
          %s513 = sadd.s32 %s507, 3
          %s514 = sld [smem:[#allocation7 + %s513]]
          %s515 = sadd.s32 %s507, 4
          %s516 = sld [smem:[#allocation7 + %s515]]
          %s517 = sadd.s32 %s507, 5
          %s518 = sld [smem:[#allocation7 + %s517]]
          %s519 = sadd.s32 %s507, 6
          %s520 = sld [smem:[#allocation7 + %s519]]
          %s521 = sadd.s32 %s507, 7
          %s522 = sld [smem:[#allocation7 + %s521]]
          %s523 = sadd.s32 %s507, 8
          %s524 = sld [smem:[#allocation7 + %s523]]
          %s525 = sadd.s32 %s507, 9
          %s526 = sld [smem:[#allocation7 + %s525]]
          %s527 = sadd.s32 %s333, %s505
          %s528 = sld [smem:[#allocation9 + %s527]]
          %v529 = vstv %s514
          %v530 = vsub.f32 %v328, %v529
          %s531 = ssub.f32 %s522, %s516
          %v532 = vstv %s531
          %v533 = vmul.f32 %v530, %v532
          %v534 = vstv %s516
          %v535 = vsub.f32 %v329, %v534
          %s536 = ssub.f32 %s520, %s514
          %v537 = vstv %s536
          %v538 = vmul.f32 %v535, %v537
          %v539 = vsub.f32 %v533, %v538
          %v540 = vstv %s526
          %v541 = vmul.f32 %v539, %v540
          %v542 = vstv %s520
          %v543 = vsub.f32 %v328, %v542
          %s544 = ssub.f32 %s510, %s522
          %v545 = vstv %s544
          %v546 = vmul.f32 %v543, %v545
          %v547 = vstv %s522
          %v548 = vsub.f32 %v329, %v547
          %s549 = ssub.f32 %s508, %s520
          %v550 = vstv %s549
          %v551 = vmul.f32 %v548, %v550
          %v552 = vsub.f32 %v546, %v551
          %v553 = vmul.f32 %v552, %v540
          %v554 = vstv %s508
          %v555 = vsub.f32 %v328, %v554
          %s556 = ssub.f32 %s516, %s510
          %v557 = vstv %s556
          %v558 = vmul.f32 %v555, %v557
          %v559 = vstv %s510
          %v560 = vsub.f32 %v329, %v559
          %s561 = ssub.f32 %s514, %s508
          %v562 = vstv %s561
          %v563 = vmul.f32 %v560, %v562
          %v564 = vsub.f32 %v558, %v563
          %v565 = vmul.f32 %v564, %v540
          %v566 = vstv %s512
          %v567 = vmul.f32 %v541, %v566
          %v568 = vstv %s518
          %v569 = vmul.f32 %v553, %v568
          %v570 = vadd.f32 %v567, %v569
          %v571 = vstv %s524
          %v572 = vmul.f32 %v565, %v571
          %v573 = vadd.f32 %v570, %v572
          %vm574 = vcmp.gt.f32.partialorder %v541, 0.0
          %vm575 = vcmp.gt.f32.partialorder %v553, 0.0
          %vm576 = vmand %vm574, %vm575
          %vm577 = vcmp.gt.f32.partialorder %v565, 0.0
          %vm578 = vmand %vm576, %vm577
          %vm579 = vcmp.ge.f32.partialorder %v573, 0.0
          %vm580 = vmand %vm578, %vm579
          %vm581 = vcmp.lt.f32.partialorder %v573, %v502
          %vm582 = vmand %vm580, %vm581
          %v583 = vsel %vm582, %v573, %v502
          %v584 = vstv %s528
          %v585 = vsel %vm582, %v584, %v504
          %s586 = sadd.s32 %s343, 3
          %s587 = smul.u32 %s586, 10
          %s588 = sadd.s32 %s334, %s587
          %s589 = sld [smem:[#allocation7 + %s588]]
          %s590 = sadd.s32 %s588, 1
          %s591 = sld [smem:[#allocation7 + %s590]]
          %s592 = sadd.s32 %s588, 2
          %s593 = sld [smem:[#allocation7 + %s592]]
          %s594 = sadd.s32 %s588, 3
          %s595 = sld [smem:[#allocation7 + %s594]]
          %s596 = sadd.s32 %s588, 4
          %s597 = sld [smem:[#allocation7 + %s596]]
          %s598 = sadd.s32 %s588, 5
          %s599 = sld [smem:[#allocation7 + %s598]]
          %s600 = sadd.s32 %s588, 6
          %s601 = sld [smem:[#allocation7 + %s600]]
          %s602 = sadd.s32 %s588, 7
          %s603 = sld [smem:[#allocation7 + %s602]]
          %s604 = sadd.s32 %s588, 8
          %s605 = sld [smem:[#allocation7 + %s604]]
          %s606 = sadd.s32 %s588, 9
          %s607 = sld [smem:[#allocation7 + %s606]]
          %s608 = sadd.s32 %s333, %s586
          %s609 = sld [smem:[#allocation9 + %s608]]
          %v610 = vstv %s595
          %v611 = vsub.f32 %v328, %v610
          %s612 = ssub.f32 %s603, %s597
          %v613 = vstv %s612
          %v614 = vmul.f32 %v611, %v613
          %v615 = vstv %s597
          %v616 = vsub.f32 %v329, %v615
          %s617 = ssub.f32 %s601, %s595
          %v618 = vstv %s617
          %v619 = vmul.f32 %v616, %v618
          %v620 = vsub.f32 %v614, %v619
          %v621 = vstv %s607
          %v622 = vmul.f32 %v620, %v621
          %v623 = vstv %s601
          %v624 = vsub.f32 %v328, %v623
          %s625 = ssub.f32 %s591, %s603
          %v626 = vstv %s625
          %v627 = vmul.f32 %v624, %v626
          %v628 = vstv %s603
          %v629 = vsub.f32 %v329, %v628
          %s630 = ssub.f32 %s589, %s601
          %v631 = vstv %s630
          %v632 = vmul.f32 %v629, %v631
          %v633 = vsub.f32 %v627, %v632
          %v634 = vmul.f32 %v633, %v621
          %v635 = vstv %s589
          %v636 = vsub.f32 %v328, %v635
          %s637 = ssub.f32 %s597, %s591
          %v638 = vstv %s637
          %v639 = vmul.f32 %v636, %v638
          %v640 = vstv %s591
          %v641 = vsub.f32 %v329, %v640
          %s642 = ssub.f32 %s595, %s589
          %v643 = vstv %s642
          %v644 = vmul.f32 %v641, %v643
          %v645 = vsub.f32 %v639, %v644
          %v646 = vmul.f32 %v645, %v621
          %v647 = vstv %s593
          %v648 = vmul.f32 %v622, %v647
          %v649 = vstv %s599
          %v650 = vmul.f32 %v634, %v649
          %v651 = vadd.f32 %v648, %v650
          %v652 = vstv %s605
          %v653 = vmul.f32 %v646, %v652
          %v654 = vadd.f32 %v651, %v653
          %vm655 = vcmp.gt.f32.partialorder %v622, 0.0
          %vm656 = vcmp.gt.f32.partialorder %v634, 0.0
          %vm657 = vmand %vm655, %vm656
          %vm658 = vcmp.gt.f32.partialorder %v646, 0.0
          %vm659 = vmand %vm657, %vm658
          %vm660 = vcmp.ge.f32.partialorder %v654, 0.0
          %vm661 = vmand %vm659, %vm660
          %vm662 = vcmp.lt.f32.partialorder %v654, %v583
          %vm663 = vmand %vm661, %vm662
          %v664 = vsel %vm663, %v654, %v583
          %v665 = vstv %s609
          %v666 = vsel %vm663, %v665, %v585
        $region65: #{tpu_custom_call.1} parent=43 // loop_footer
          %s338 = sadd.s32 %s336, 1
        $region66: #{tpu_custom_call.1} parent=43 // loop_footer_branch
          %335 = sbr.rel target = $region62
        $region67: #{tpu_custom_call.1} parent=43 // loop_exit
          _
        %667 = vst [vmem:[%s318] sm:$0xff] %v342
        %s668 = sand.u32 %s182, 1
        %s669 = scalar_lea.sflag [#allocation3], %s668
        %s670 = sand.u32 %s182, 1
        %s671 = smul.addr %s670, 8
        %s672 = scalar_lea.vmem [#allocation11], %s671
        // Predicated region
        $region68: #{tpu_custom_call.1} parent=43 // pred_check
          %p673 = pneg %p192
        $region69: #{tpu_custom_call.1} parent=43 // pred_check_branch
          %675 = sbr.rel (%p673) target = $region71
        $region70: #{tpu_custom_call.1} parent=43 // pred_region
          %s677 = ssub.s32 128, 128
          %678 = vsyncadd %s669, %s677
          %s679 = sadd.s32 %s29, %s28
          %s680 = smul.addr %s679, 128
          %s681 = scalar_lea.hbm %s6, %s680
          %s683 = sshll.u32 %s672, 4
          %s684 = int_to_ptr.vmem [resolvable:$true] %s683
          %686 = dma.vmem_to_hbm [thread:$0]  %s684, 128, %s681, %s669
        $region71: #{tpu_custom_call.1} parent=43 // pred_fallthru
          _
      $region44: #{tpu_custom_call.1} parent=5 // pred_fallthru
        _
      %p687 = scmp.le.s32.totalorder 2, %s19
      // Predicated region
      $region72: #{tpu_custom_call.1} parent=5 // pred_check
        %p688 = pneg %p687
      $region73: #{tpu_custom_call.1} parent=5 // pred_check_branch
        %690 = sbr.rel (%p688) target = $region75
      $region74: #{tpu_custom_call.1} parent=5 // pred_region
        %s691 = ssub.s32 %s19, 2
        // Predicated region
        $region76: #{tpu_custom_call.1} parent=74 // pred_check
          %p692 = pneg %p198
        $region77: #{tpu_custom_call.1} parent=74 // pred_check_branch
          %694 = sbr.rel (%p692) target = $region79
        $region78: #{tpu_custom_call.1} parent=74 // pred_region
          %s695 = sand.u32 %s183, 1
          %s696 = scalar_lea.sflag [#allocation3], %s695
          %s697 = sand.u32 %s183, 1
          %s698 = smul.addr %s697, 8
          %s699 = scalar_lea.vmem [#allocation11], %s698
          %700 = dma.done %s696, 128
        $region79: #{tpu_custom_call.1} parent=74 // pred_fallthru
          _
      $region75: #{tpu_custom_call.1} parent=5 // pred_fallthru
        _
    $region6: #{tpu_custom_call.1} parent=1 // loop_footer
      %s23 = sadd.s32 1, %s19
    $region7: #{tpu_custom_call.1} parent=1 // loop_footer_branch
      %18 = sbr.rel target = $region3
    $region8: #{tpu_custom_call.1} parent=1 // loop_exit
      _
    %701 = vsyncpa [#allocation3], 1
    %s702 = scalar_lea.sflag [#allocation3], 1
    %703 = vsyncpa %s702, 1
    %704 = vsyncpa [#allocation4], 1
    %s705 = scalar_lea.sflag [#allocation4], 1
    %706 = vsyncpa %s705, 1
    %707 = vsyncpa [#allocation8], 1
    %708 = vsyncpa [#allocation5], 1
    %s709 = scalar_lea.sflag [#allocation5], 1
    %710 = vsyncpa %s709, 1
    %711 = vsyncpa [#allocation10], 1

</llo_original>
